<compile_context>
chip_gen: v7x
topology: tpu7x:2x2x1
jax: 0.10.0
libtpu: 0.0.40
codegen_flags: <defaults>
</compile_context>

<pallas_src>
import functools

import jax
import jax.numpy as jnp
from jax.experimental import pallas as pl
from jax.experimental.pallas import tpu as pltpu

# Architecture constants fixed by the GINENet definition (G = 0).
H2 = 64      # conv2 output width:  GINEConv(MLP([D, 64]))
H3 = 96      # lin1 output width:   MLP([D + 64, 96]);  Z = 96
LANES = 128  # slab packing width (lane-dense)

# Row order of the bias / folded-BatchNorm vector slab.
_VEC_ORDER = ("we", "be",
              "b1", "s1", "t1",
              "b2", "s2", "t2",
              "b3", "s3", "t3",
              "b4", "s4", "t4",
              "b5", "s5", "t5")
_W_ORDER = ("w1", "w2", "w3", "w4", "w5")


def _weight_layout(D, C):
    """Shapes and row offsets of each weight matrix inside the weight slab."""
    shapes = {"w1": (D, D), "w2": (D, H2), "w3": (D + H2, H3),
              "w4": (H3, H3), "w5": (H3, C)}
    offsets, r = {}, 0
    for name in _W_ORDER:
        offsets[name] = r
        r += shapes[name][0]
    return shapes, offsets, r


def _ginenet_kernel(g_ref, w_ref, v_ref, o_ref, *, N, D, E, C):
    """Whole GINENet forward for one graph; all operands resident in VMEM."""
    w_shapes, w_offs, _ = _weight_layout(D, C)

    def weight(name):
        r0 = w_offs[name]
        rows, cols = w_shapes[name]
        return w_ref[r0:r0 + rows, 0:cols]

    def vec(name, cols):
        r0 = _VEC_ORDER.index(name)
        return v_ref[r0:r0 + 1, 0:cols]

    # ---- unpack the graph slab ------------------------------------------
    x    = g_ref[0:N, 0:D]                          # node features        [N, D]
    gat  = g_ref[N:N + E, 0:N]                      # one-hot src gather   [E, N]
    sct  = g_ref[N + E:2 * N + E, 0:E]              # one-hot dst scatter  [N, E]
    eraw = g_ref[2 * N + E:2 * N + 2 * E, 0:1]      # raw edge_attr        [E, 1]

    # Edge-feature lift: Linear(1, D) on scalar edge attributes (VPU broadcast,
    # avoids a K=1 MXU matmul).
    e_feat = eraw * vec("we", D) + vec("be", D)     # [E, D]

    # TODO(synk): BatchNorm1d uses eval-mode running statistics folded to a
    # per-channel scale/shift; training-mode batch-stat updates are not implemented.
    def mlp_layer(h, w_name, b_name, s_name, t_name, width):
        # Linear -> ReLU -> BatchNorm1d (eval, folded).
        z = jnp.dot(h, weight(w_name), preferred_element_type=jnp.float32)
        z = jnp.maximum(z + vec(b_name, width), 0.0)
        return z * vec(s_name, width) + vec(t_name, width)

    def gine_aggregate(h):
        # sum_{j in N(i)} relu(h_j + e_ij), as dense one-hot matmuls on the MXU.
        msg = jnp.maximum(
            jnp.dot(gat, h, preferred_element_type=jnp.float32) + e_feat, 0.0)
        return jnp.dot(sct, msg, preferred_element_type=jnp.float32)

    eps = 0.0  # GINEConv default (train_eps=False)

    # conv1 / conv2:  nn((1 + eps) * x_i + aggregate_i)
    x1 = mlp_layer((1.0 + eps) * x + gine_aggregate(x),
                   "w1", "b1", "s1", "t1", D)                        # [N, D]
    x2 = mlp_layer((1.0 + eps) * x1 + gine_aggregate(x1),
                   "w2", "b2", "s2", "t2", H2)                       # [N, 64]

    # lin1 on cat([x1, x2], dim=1).
    x3 = mlp_layer(jnp.concatenate([x1, x2], axis=1),
                   "w3", "b3", "s3", "t3", H3)                       # [N, 96]

    # global_max_pool: single graph (batch == 0 for every node).
    pooled = jnp.max(x3, axis=0, keepdims=True)                      # [1, 96]

    # mlp1 head.
    z   = mlp_layer(pooled, "w4", "b4", "s4", "t4", H3)              # [1, 96]
    out = mlp_layer(z, "w5", "b5", "s5", "t5", C)                    # [1, C]

    o_ref[...] = out.astype(o_ref.dtype)


def _pad_lanes(a):
    """[r, c] (or [c]) -> [r, LANES] float32, zero-padded along lanes."""
    a = jnp.asarray(a, jnp.float32)
    if a.ndim == 1:
        a = a.reshape(1, -1)
    assert a.shape[1] <= LANES, a.shape
    return jnp.pad(a, ((0, 0), (0, LANES - a.shape[1])))


def build_slabs(x, edge_index, edge_attr, params):
    """Coalesce all kernel operands into 3 lane-padded slabs (3 DMAs total)."""
    N = x.shape[0]
    src, dst = edge_index[0], edge_index[1]
    eye_n = jnp.eye(N, dtype=jnp.float32)
    gat = eye_n[src]        # [E, N]: gat[e, j] = 1  iff  src[e] == j
    sct = eye_n[dst].T      # [N, E]: sct[i, e] = 1  iff  dst[e] == i

    graph_slab = jnp.concatenate(
        [_pad_lanes(x), _pad_lanes(gat), _pad_lanes(sct), _pad_lanes(edge_attr)],
        axis=0)
    weight_slab = jnp.concatenate([_pad_lanes(params[k]) for k in _W_ORDER], axis=0)
    vec_slab = jnp.concatenate([_pad_lanes(params[k]) for k in _VEC_ORDER], axis=0)
    return graph_slab, weight_slab, vec_slab


def ginenet_forward(x, edge_index, edge_attr, params):
    """x: [N, D] nodes, edge_index: [2, E] (src, dst), edge_attr: [E, 1] scalars."""
    N, D = x.shape
    E = edge_index.shape[1]
    C = params["b5"].shape[-1]
    graph_slab, weight_slab, vec_slab = build_slabs(x, edge_index, edge_attr, params)

    kernel = functools.partial(_ginenet_kernel, N=N, D=D, E=E, C=C)
    vmem = pltpu.MemorySpace.VMEM
    # Single grid point: no grid / pipeline machinery; whole arrays live in VMEM.
    return pl.pallas_call(
        kernel,
        out_shape=jax.ShapeDtypeStruct((1, C), jnp.float32),
        in_specs=[pl.BlockSpec(memory_space=vmem)] * 3,
        out_specs=pl.BlockSpec(memory_space=vmem),
    )(graph_slab, weight_slab, vec_slab)


def make_params(key, D, C):
    """Deterministic parameters matching GINENet(D, C, G=0), eval mode.

    Linear weights stored transposed ([in, out]); every BatchNorm1d folded into
    per-channel (scale, shift) from (gamma, beta, running_mean, running_var).
    """
    ks = iter(jax.random.split(key, 32))
    s = 0.1

    def linear(n_in, n_out):
        w = s * jax.random.normal(next(ks), (n_in, n_out), jnp.float32)
        b = s * jax.random.normal(next(ks), (n_out,), jnp.float32)
        return w, b

    def bn(n):
        gamma = 1.0 + 0.1 * jax.random.normal(next(ks), (n,), jnp.float32)
        beta = 0.1 * jax.random.normal(next(ks), (n,), jnp.float32)
        mean = 0.1 * jax.random.normal(next(ks), (n,), jnp.float32)
        var = 1.0 + 0.5 * jax.random.uniform(next(ks), (n,), jnp.float32)
        scale = gamma * jax.lax.rsqrt(var + 1e-5)
        shift = beta - mean * scale
        return scale, shift

    p = {}
    # TODO(synk): the PyTorch forward builds a fresh randomly-initialized
    # Linear(1, D) for the edge lift on every call; modeled here as a fixed
    # deterministic parameter (we, be).
    p["we"], p["be"] = linear(1, D)
    p["w1"], p["b1"] = linear(D, D);        p["s1"], p["t1"] = bn(D)
    p["w2"], p["b2"] = linear(D, H2);       p["s2"], p["t2"] = bn(H2)
    p["w3"], p["b3"] = linear(D + H2, H3);  p["s3"], p["t3"] = bn(H3)
    p["w4"], p["b4"] = linear(H3, H3);      p["s4"], p["t4"] = bn(H3)
    p["w5"], p["b5"] = linear(H3, C);       p["s5"], p["t5"] = bn(C)
    return p


def ginenet_reference(x, edge_index, edge_attr, params):
    """Pure-JAX reference (scatter-add formulation) for validation."""
    src, dst = edge_index[0], edge_index[1]
    N = x.shape[0]
    e_feat = edge_attr * params["we"] + params["be"]            # [E, D]

    def layer(h, w, b, sc, sh):
        return jnp.maximum(h @ w + b, 0.0) * sc + sh

    def agg(h):
        msg = jnp.maximum(h[src] + e_feat, 0.0)
        return jnp.zeros((N, h.shape[1]), jnp.float32).at[dst].add(msg)

    x1 = layer(x + agg(x), params["w1"], params["b1"], params["s1"], params["t1"])
    x2 = layer(x1 + agg(x1), params["w2"], params["b2"], params["s2"], params["t2"])
    x3 = layer(jnp.concatenate([x1, x2], axis=1),
               params["w3"], params["b3"], params["s3"], params["t3"])
    pooled = jnp.max(x3, axis=0, keepdims=True)
    z = layer(pooled, params["w4"], params["b4"], params["s4"], params["t4"])
    return layer(z, params["w5"], params["b5"], params["s5"], params["t5"])


if __name__ == "__main__":
    N, D, C = 16, 32, 8     # nodes, node-feature dim, classes

    key = jax.random.PRNGKey(0)
    k_x, k_e, k_p = jax.random.split(key, 3)

    x = jax.random.normal(k_x, (N, D), jnp.float32)

    # Deterministic bidirectional ring graph (single graph, batch == 0).
    src = jnp.arange(N, dtype=jnp.int32)
    dst = (src + 1) % N
    edge_index = jnp.stack([jnp.concatenate([src, dst]),
                            jnp.concatenate([dst, src])], axis=0)    # [2, 2N]
    E = edge_index.shape[1]

    # Scalar edge attrs (D_e = 1 < D_n = D): module lifts them with Linear(1, D).
    edge_attr = jax.random.normal(k_e, (E, 1), jnp.float32)

    params = make_params(k_p, D, C)

    out = jax.block_until_ready(ginenet_forward(x, edge_index, edge_attr, params))
    assert out.shape == (1, C), out.shape

    with jax.default_matmul_precision("highest"):
        ref = jax.block_until_ready(ginenet_reference(x, edge_index, edge_attr, params))
    assert jnp.allclose(out, ref, rtol=5e-2, atol=5e-2), (out, ref)

    print("KERNEL_OK")
</pallas_src>

<mosaic_0001>
module attributes {stable_mosaic.version = 11 : i64} {
  func.func @_ginenet_kernel(%arg0: memref<96x128xf32, #tpu.memory_space<vmem>>, %arg1: memref<352x128xf32, #tpu.memory_space<vmem>>, %arg2: memref<17x128xf32, #tpu.memory_space<vmem>>, %arg3: memref<1x8xf32, #tpu.memory_space<vmem>>) attributes {dimension_semantics = [], scalar_prefetch = 0 : i64, scratch_operands = 0 : i64, tpu.core_type = #tpu.core_type<tc>} {
    %c0 = arith.constant 0 : index
    %c0_0 = arith.constant 0 : index
    %0 = vector.load %arg0[%c0, %c0_0] : memref<96x128xf32, #tpu.memory_space<vmem>>, vector<16x32xf32>
    %c16 = arith.constant 16 : index
    %c0_1 = arith.constant 0 : index
    %1 = vector.load %arg0[%c16, %c0_1] : memref<96x128xf32, #tpu.memory_space<vmem>>, vector<32x16xf32>
    %c48 = arith.constant 48 : index
    %c0_2 = arith.constant 0 : index
    %2 = vector.load %arg0[%c48, %c0_2] : memref<96x128xf32, #tpu.memory_space<vmem>>, vector<16x32xf32>
    %c64 = arith.constant 64 : index
    %c0_3 = arith.constant 0 : index
    %3 = vector.load %arg0[%c64, %c0_3] : memref<96x128xf32, #tpu.memory_space<vmem>>, vector<32x1xf32>
    %c0_4 = arith.constant 0 : index
    %c0_5 = arith.constant 0 : index
    %4 = vector.load %arg2[%c0_4, %c0_5] : memref<17x128xf32, #tpu.memory_space<vmem>>, vector<1x32xf32>
    %5 = vector.broadcast %3 : vector<32x1xf32> to vector<32x32xf32>
    %6 = vector.broadcast %4 : vector<1x32xf32> to vector<32x32xf32>
    %7 = arith.mulf %5, %6 : vector<32x32xf32>
    %c1 = arith.constant 1 : index
    %c0_6 = arith.constant 0 : index
    %8 = vector.load %arg2[%c1, %c0_6] : memref<17x128xf32, #tpu.memory_space<vmem>>, vector<1x32xf32>
    %9 = vector.broadcast %8 : vector<1x32xf32> to vector<32x32xf32>
    %10 = arith.addf %7, %9 : vector<32x32xf32>
    %cst = arith.constant 1.000000e+00 : f32
    %11 = vector.broadcast %cst : f32 to vector<16x32xf32>
    %12 = arith.mulf %11, %0 : vector<16x32xf32>
    %cst_7 = arith.constant dense<0.000000e+00> : vector<32x32xf32>
    %13 = tpu.matmul %1, %0, %cst_7 {dimension_numbers = #tpu.dot_dimension_numbers<[1], [0], [0], [1], [0, 0, 1, 1], [], []>} : vector<32x16xf32>, vector<16x32xf32>, vector<32x32xf32> -> vector<32x32xf32>
    %14 = arith.addf %13, %10 : vector<32x32xf32>
    %cst_8 = arith.constant 0.000000e+00 : f32
    %15 = vector.broadcast %cst_8 : f32 to vector<32x32xf32>
    %16 = arith.maximumf %14, %15 : vector<32x32xf32>
    %cst_9 = arith.constant dense<0.000000e+00> : vector<16x32xf32>
    %17 = tpu.matmul %2, %16, %cst_9 {dimension_numbers = #tpu.dot_dimension_numbers<[1], [0], [0], [1], [0, 0, 1, 1], [], []>} : vector<16x32xf32>, vector<32x32xf32>, vector<16x32xf32> -> vector<16x32xf32>
    %18 = arith.addf %12, %17 : vector<16x32xf32>
    %c0_10 = arith.constant 0 : index
    %c0_11 = arith.constant 0 : index
    %19 = vector.load %arg1[%c0_10, %c0_11] : memref<352x128xf32, #tpu.memory_space<vmem>>, vector<32x32xf32>
    %cst_12 = arith.constant dense<0.000000e+00> : vector<16x32xf32>
    %20 = tpu.matmul %18, %19, %cst_12 {dimension_numbers = #tpu.dot_dimension_numbers<[1], [0], [0], [1], [0, 0, 1, 1], [], []>} : vector<16x32xf32>, vector<32x32xf32>, vector<16x32xf32> -> vector<16x32xf32>
    %c2 = arith.constant 2 : index
    %c0_13 = arith.constant 0 : index
    %21 = vector.load %arg2[%c2, %c0_13] : memref<17x128xf32, #tpu.memory_space<vmem>>, vector<1x32xf32>
    %22 = vector.broadcast %21 : vector<1x32xf32> to vector<16x32xf32>
    %23 = arith.addf %20, %22 : vector<16x32xf32>
    %cst_14 = arith.constant 0.000000e+00 : f32
    %24 = vector.broadcast %cst_14 : f32 to vector<16x32xf32>
    %25 = arith.maximumf %23, %24 : vector<16x32xf32>
    %c3 = arith.constant 3 : index
    %c0_15 = arith.constant 0 : index
    %26 = vector.load %arg2[%c3, %c0_15] : memref<17x128xf32, #tpu.memory_space<vmem>>, vector<1x32xf32>
    %27 = vector.broadcast %26 : vector<1x32xf32> to vector<16x32xf32>
    %28 = arith.mulf %25, %27 : vector<16x32xf32>
    %c4 = arith.constant 4 : index
    %c0_16 = arith.constant 0 : index
    %29 = vector.load %arg2[%c4, %c0_16] : memref<17x128xf32, #tpu.memory_space<vmem>>, vector<1x32xf32>
    %30 = vector.broadcast %29 : vector<1x32xf32> to vector<16x32xf32>
    %31 = arith.addf %28, %30 : vector<16x32xf32>
    %cst_17 = arith.constant 1.000000e+00 : f32
    %32 = vector.broadcast %cst_17 : f32 to vector<16x32xf32>
    %33 = arith.mulf %32, %31 : vector<16x32xf32>
    %cst_18 = arith.constant dense<0.000000e+00> : vector<32x32xf32>
    %34 = tpu.matmul %1, %31, %cst_18 {dimension_numbers = #tpu.dot_dimension_numbers<[1], [0], [0], [1], [0, 0, 1, 1], [], []>} : vector<32x16xf32>, vector<16x32xf32>, vector<32x32xf32> -> vector<32x32xf32>
    %35 = arith.addf %34, %10 : vector<32x32xf32>
    %cst_19 = arith.constant 0.000000e+00 : f32
    %36 = vector.broadcast %cst_19 : f32 to vector<32x32xf32>
    %37 = arith.maximumf %35, %36 : vector<32x32xf32>
    %cst_20 = arith.constant dense<0.000000e+00> : vector<16x32xf32>
    %38 = tpu.matmul %2, %37, %cst_20 {dimension_numbers = #tpu.dot_dimension_numbers<[1], [0], [0], [1], [0, 0, 1, 1], [], []>} : vector<16x32xf32>, vector<32x32xf32>, vector<16x32xf32> -> vector<16x32xf32>
    %39 = arith.addf %33, %38 : vector<16x32xf32>
    %c32 = arith.constant 32 : index
    %c0_21 = arith.constant 0 : index
    %40 = vector.load %arg1[%c32, %c0_21] : memref<352x128xf32, #tpu.memory_space<vmem>>, vector<32x64xf32>
    %cst_22 = arith.constant dense<0.000000e+00> : vector<16x64xf32>
    %41 = tpu.matmul %39, %40, %cst_22 {dimension_numbers = #tpu.dot_dimension_numbers<[1], [0], [0], [1], [0, 0, 1, 1], [], []>} : vector<16x32xf32>, vector<32x64xf32>, vector<16x64xf32> -> vector<16x64xf32>
    %c5 = arith.constant 5 : index
    %c0_23 = arith.constant 0 : index
    %42 = vector.load %arg2[%c5, %c0_23] : memref<17x128xf32, #tpu.memory_space<vmem>>, vector<1x64xf32>
    %43 = vector.broadcast %42 : vector<1x64xf32> to vector<16x64xf32>
    %44 = arith.addf %41, %43 : vector<16x64xf32>
    %cst_24 = arith.constant 0.000000e+00 : f32
    %45 = vector.broadcast %cst_24 : f32 to vector<16x64xf32>
    %46 = arith.maximumf %44, %45 : vector<16x64xf32>
    %c6 = arith.constant 6 : index
    %c0_25 = arith.constant 0 : index
    %47 = vector.load %arg2[%c6, %c0_25] : memref<17x128xf32, #tpu.memory_space<vmem>>, vector<1x64xf32>
    %48 = vector.broadcast %47 : vector<1x64xf32> to vector<16x64xf32>
    %49 = arith.mulf %46, %48 : vector<16x64xf32>
    %c7 = arith.constant 7 : index
    %c0_26 = arith.constant 0 : index
    %50 = vector.load %arg2[%c7, %c0_26] : memref<17x128xf32, #tpu.memory_space<vmem>>, vector<1x64xf32>
    %51 = vector.broadcast %50 : vector<1x64xf32> to vector<16x64xf32>
    %52 = arith.addf %49, %51 : vector<16x64xf32>
    %53 = tpu.concatenate %31, %52 in 1 : vector<16x32xf32>, vector<16x64xf32> -> vector<16x96xf32>
    %c64_27 = arith.constant 64 : index
    %c0_28 = arith.constant 0 : index
    %54 = vector.load %arg1[%c64_27, %c0_28] : memref<352x128xf32, #tpu.memory_space<vmem>>, vector<96x96xf32>
    %cst_29 = arith.constant dense<0.000000e+00> : vector<16x96xf32>
    %55 = tpu.matmul %53, %54, %cst_29 {dimension_numbers = #tpu.dot_dimension_numbers<[1], [0], [0], [1], [0, 0, 1, 1], [], []>} : vector<16x96xf32>, vector<96x96xf32>, vector<16x96xf32> -> vector<16x96xf32>
    %c8 = arith.constant 8 : index
    %c0_30 = arith.constant 0 : index
    %56 = vector.load %arg2[%c8, %c0_30] : memref<17x128xf32, #tpu.memory_space<vmem>>, vector<1x96xf32>
    %57 = vector.broadcast %56 : vector<1x96xf32> to vector<16x96xf32>
    %58 = arith.addf %55, %57 : vector<16x96xf32>
    %cst_31 = arith.constant 0.000000e+00 : f32
    %59 = vector.broadcast %cst_31 : f32 to vector<16x96xf32>
    %60 = arith.maximumf %58, %59 : vector<16x96xf32>
    %c9 = arith.constant 9 : index
    %c0_32 = arith.constant 0 : index
    %61 = vector.load %arg2[%c9, %c0_32] : memref<17x128xf32, #tpu.memory_space<vmem>>, vector<1x96xf32>
    %62 = vector.broadcast %61 : vector<1x96xf32> to vector<16x96xf32>
    %63 = arith.mulf %60, %62 : vector<16x96xf32>
    %c10 = arith.constant 10 : index
    %c0_33 = arith.constant 0 : index
    %64 = vector.load %arg2[%c10, %c0_33] : memref<17x128xf32, #tpu.memory_space<vmem>>, vector<1x96xf32>
    %65 = vector.broadcast %64 : vector<1x96xf32> to vector<16x96xf32>
    %66 = arith.addf %63, %65 : vector<16x96xf32>
    %cst_34 = arith.constant dense<0xFF800000> : vector<96xf32>
    %67 = vector.multi_reduction <maximumf>, %66, %cst_34 [0] : vector<16x96xf32> to vector<96xf32>
    %68 = vector.shape_cast %67 : vector<96xf32> to vector<1x96xf32>
    %c160 = arith.constant 160 : index
    %c0_35 = arith.constant 0 : index
    %69 = vector.load %arg1[%c160, %c0_35] : memref<352x128xf32, #tpu.memory_space<vmem>>, vector<96x96xf32>
    %cst_36 = arith.constant dense<0.000000e+00> : vector<1x96xf32>
    %70 = tpu.matmul %68, %69, %cst_36 {dimension_numbers = #tpu.dot_dimension_numbers<[1], [0], [0], [1], [0, 0, 1, 1], [], []>} : vector<1x96xf32>, vector<96x96xf32>, vector<1x96xf32> -> vector<1x96xf32>
    %c11 = arith.constant 11 : index
    %c0_37 = arith.constant 0 : index
    %71 = vector.load %arg2[%c11, %c0_37] : memref<17x128xf32, #tpu.memory_space<vmem>>, vector<1x96xf32>
    %72 = arith.addf %70, %71 : vector<1x96xf32>
    %cst_38 = arith.constant 0.000000e+00 : f32
    %73 = vector.broadcast %cst_38 : f32 to vector<1x96xf32>
    %74 = arith.maximumf %72, %73 : vector<1x96xf32>
    %c12 = arith.constant 12 : index
    %c0_39 = arith.constant 0 : index
    %75 = vector.load %arg2[%c12, %c0_39] : memref<17x128xf32, #tpu.memory_space<vmem>>, vector<1x96xf32>
    %76 = arith.mulf %74, %75 : vector<1x96xf32>
    %c13 = arith.constant 13 : index
    %c0_40 = arith.constant 0 : index
    %77 = vector.load %arg2[%c13, %c0_40] : memref<17x128xf32, #tpu.memory_space<vmem>>, vector<1x96xf32>
    %78 = arith.addf %76, %77 : vector<1x96xf32>
    %c256 = arith.constant 256 : index
    %c0_41 = arith.constant 0 : index
    %79 = vector.load %arg1[%c256, %c0_41] : memref<352x128xf32, #tpu.memory_space<vmem>>, vector<96x8xf32>
    %cst_42 = arith.constant dense<0.000000e+00> : vector<1x8xf32>
    %80 = tpu.matmul %78, %79, %cst_42 {dimension_numbers = #tpu.dot_dimension_numbers<[1], [0], [0], [1], [0, 0, 1, 1], [], []>} : vector<1x96xf32>, vector<96x8xf32>, vector<1x8xf32> -> vector<1x8xf32>
    %c14 = arith.constant 14 : index
    %c0_43 = arith.constant 0 : index
    %81 = vector.load %arg2[%c14, %c0_43] : memref<17x128xf32, #tpu.memory_space<vmem>>, vector<1x8xf32>
    %82 = arith.addf %80, %81 : vector<1x8xf32>
    %cst_44 = arith.constant 0.000000e+00 : f32
    %83 = vector.broadcast %cst_44 : f32 to vector<1x8xf32>
    %84 = arith.maximumf %82, %83 : vector<1x8xf32>
    %c15 = arith.constant 15 : index
    %c0_45 = arith.constant 0 : index
    %85 = vector.load %arg2[%c15, %c0_45] : memref<17x128xf32, #tpu.memory_space<vmem>>, vector<1x8xf32>
    %86 = arith.mulf %84, %85 : vector<1x8xf32>
    %c16_46 = arith.constant 16 : index
    %c0_47 = arith.constant 0 : index
    %87 = vector.load %arg2[%c16_46, %c0_47] : memref<17x128xf32, #tpu.memory_space<vmem>>, vector<1x8xf32>
    %88 = arith.addf %86, %87 : vector<1x8xf32>
    %c0_48 = arith.constant 0 : index
    %c0_49 = arith.constant 0 : index
    %89 = vector.load %arg3[%c0_48, %c0_49] : memref<1x8xf32, #tpu.memory_space<vmem>>, vector<1x8xf32>
    tpu.vector_store %arg3[%c0_48, %c0_49], %88 {strides = array<i32>} : memref<1x8xf32, #tpu.memory_space<vmem>>, vector<1x8xf32>,
    return
  }
}

</mosaic_0001>

<llo_original>
// kernel: tpu_custom_call.1
$region0: #{tpu_custom_call.1}
  #allocation0 [shape = 'u32[]', space=smem, size = 0x4, offset = 0x4, fixed_abs, tag = 'smem constant byte address 0x4 - core index']
  #allocation1 [shape = 'u32[144,128]{1,0:T(1,128)}', space=vmem, size = 0x12000, scoped, tag = 'internal scratch']
  %s0 = inlined_call_operand.hbm [shape: f32[96,128], index: 0, kind: input, shape index: {}]
  %s1 = inlined_call_operand.hbm [shape: f32[352,128], index: 1, kind: input, shape index: {}]
  %s2 = inlined_call_operand.hbm [shape: f32[17,128], index: 2, kind: input, shape index: {}]
  %s3 = inlined_call_operand.hbm [shape: f32[1,8], index: 3, kind: output, shape index: {}]
  %s4 = sld [smem:[#allocation0]]
  $region34: #{tpu_custom_call.1} parent=0
    _
  %s6 = ssub.s32 1, %s4
  %s7 = scalar_select 0, %s6, %s4
  $region1: #{tpu_custom_call.1} parent=0
    #allocation2 [shape = 'u8[49152]{0}', space=vmem, size = 0xc000, scoped, tag = 'input window, operand 0, single buffered']
    #allocation3 [shape = 's32[1]{0}', space=sflag, size = 0x4, scoped, tag = 'scoped memory for tpu_custom_call.1']
    #allocation4 [shape = 's32[1]{0}', space=sflag, size = 0x4, scoped, tag = 'scoped memory for tpu_custom_call.1']
    #allocation5 [shape = 'u8[180224]{0}', space=vmem, size = 0x2c000, scoped, tag = 'input window, operand 1, single buffered']
    #allocation6 [shape = 's32[1]{0}', space=sflag, size = 0x4, scoped, tag = 'scoped memory for tpu_custom_call.1']
    #allocation7 [shape = 'u8[12288]{0}', space=vmem, size = 0x3000, scoped, tag = 'input window, operand 2, single buffered']
    #allocation8 [shape = 'u8[512]{0}', space=vmem, size = 0x400, scoped, tag = 'output window, operand 0, single buffered']
    %8 = vsyncpa [#allocation3], 0
    %9 = vsyncpa [#allocation6], 0
    %10 = vsyncpa [#allocation4], 0
    // Predicated region
    $region2: #{tpu_custom_call.1} parent=1 // pred_check
      _
    $region3: #{tpu_custom_call.1} parent=1 // pred_check_branch
      %12 = sbr.rel (0) target = $region5
    $region4: #{tpu_custom_call.1} parent=1 // pred_region
      %s14 = ssub.s32 1536, 1536
      %15 = vsyncadd [#allocation3], %s14
      %s16 = sshll.u32 [#allocation2], 4
      %s17 = int_to_ptr.vmem [resolvable:$true] %s16
      %22 = dma.hbm_to_vmem [thread:$0]  %s0, 1536, %s17, [#allocation3], 128, 128, 8
    $region5: #{tpu_custom_call.1} parent=1 // pred_fallthru
      _
    // Predicated region
    $region6: #{tpu_custom_call.1} parent=1 // pred_check
      _
    $region7: #{tpu_custom_call.1} parent=1 // pred_check_branch
      %24 = sbr.rel (0) target = $region9
    $region8: #{tpu_custom_call.1} parent=1 // pred_region
      %s26 = ssub.s32 5632, 5632
      %27 = vsyncadd [#allocation6], %s26
      %s28 = sshll.u32 [#allocation5], 4
      %s29 = int_to_ptr.vmem [resolvable:$true] %s28
      %34 = dma.hbm_to_vmem [thread:$0]  %s1, 5632, %s29, [#allocation6], 128, 128, 8
    $region9: #{tpu_custom_call.1} parent=1 // pred_fallthru
      _
    // Predicated region
    $region10: #{tpu_custom_call.1} parent=1 // pred_check
      _
    $region11: #{tpu_custom_call.1} parent=1 // pred_check_branch
      %36 = sbr.rel (0) target = $region13
    $region12: #{tpu_custom_call.1} parent=1 // pred_region
      %s38 = ssub.s32 384, 384
      %39 = vsyncadd [#allocation6], %s38
      %s40 = sshll.u32 [#allocation7], 4
      %s41 = int_to_ptr.vmem [resolvable:$true] %s40
      %46 = dma.hbm_to_vmem [thread:$0]  %s2, 384, %s41, [#allocation6], 128, 128, 8
    $region13: #{tpu_custom_call.1} parent=1 // pred_fallthru
      _
    // Predicated region
    $region14: #{tpu_custom_call.1} parent=1 // pred_check
      _
    $region15: #{tpu_custom_call.1} parent=1 // pred_check_branch
      %48 = sbr.rel (0) target = $region17
    $region16: #{tpu_custom_call.1} parent=1 // pred_region
      %49 = dma.done [#allocation3], 1536
    $region17: #{tpu_custom_call.1} parent=1 // pred_fallthru
      _
    // Predicated region
    $region18: #{tpu_custom_call.1} parent=1 // pred_check
      _
    $region19: #{tpu_custom_call.1} parent=1 // pred_check_branch
      %51 = sbr.rel (0) target = $region21
    $region20: #{tpu_custom_call.1} parent=1 // pred_region
      %52 = dma.done [#allocation6], 5632
    $region21: #{tpu_custom_call.1} parent=1 // pred_fallthru
      _
    // Predicated region
    $region22: #{tpu_custom_call.1} parent=1 // pred_check
      _
    $region23: #{tpu_custom_call.1} parent=1 // pred_check_branch
      %54 = sbr.rel (0) target = $region25
    $region24: #{tpu_custom_call.1} parent=1 // pred_region
      %55 = dma.done [#allocation6], 384
    $region25: #{tpu_custom_call.1} parent=1 // pred_fallthru
      _
    %v56 = vld [vmem:[#allocation2] sm:$0xff]
    %v57 = vld [vmem:[#allocation2 + $0x8] sm:$0xff]
    %v58 = vld [vmem:[#allocation2 + $0x10] sm:$0xff]
    %v59 = vld [vmem:[#allocation2 + $0x18] sm:$0xff]
    %v60 = vld [vmem:[#allocation2 + $0x20] sm:$0xff]
    %v61 = vld [vmem:[#allocation2 + $0x28] sm:$0xff]
    %v62 = vld [vmem:[#allocation2 + $0x30] sm:$0xff]
    %v63 = vld [vmem:[#allocation2 + $0x38] sm:$0xff]
    %v64 = vld [vmem:[#allocation2 + $0x40] sm:$0xff]
    %v65 = vld [vmem:[#allocation2 + $0x48] sm:$0xff]
    %v66 = vld [vmem:[#allocation2 + $0x50] sm:$0xff]
    %v67 = vld [vmem:[#allocation2 + $0x58] sm:$0xff]
    %v68 = vld [vmem:[#allocation7] sm:$0x1]
    %70 = vset.pattern.permute.xlu0 0
    %71 = vperm.xlu0 %70, %v64
    %v72 = vpop.permute.xlu0 %71
    %75 = vset.pattern.permute.xlu0 0
    %76 = vperm.xlu0 %75, %v65
    %v77 = vpop.permute.xlu0 %76
    %80 = vset.pattern.permute.xlu0 0
    %81 = vperm.xlu0 %80, %v66
    %v82 = vpop.permute.xlu0 %81
    %85 = vset.pattern.permute.xlu0 0
    %86 = vperm.xlu0 %85, %v67
    %v87 = vpop.permute.xlu0 %86
    %v89 = vlaneseq
    %v90 = vshrl.u32 %v89, 7
    %v91 = vsub.s32 0, %v90
    %v92 = vrot.slane %v68, %v91
    %v93 = vmul.f32 %v72, %v92
    %v94 = vmul.f32 %v77, %v92
    %v95 = vmul.f32 %v82, %v92
    %v96 = vmul.f32 %v87, %v92
    %v97 = vld [vmem:[#allocation7 + $0x1] sm:$0x1]
    %v98 = vlaneseq
    %v99 = vshrl.u32 %v98, 7
    %v100 = vsub.s32 0, %v99
    %v101 = vrot.slane %v97, %v100
    %v102 = vadd.f32 %v93, %v101
    %v103 = vadd.f32 %v94, %v101
    %v104 = vadd.f32 %v95, %v101
    %v105 = vadd.f32 %v96, %v101
    %vm106 = vcmask 130048
    %v108 = vsel %vm106, %v58, 0
    %v111 = vsel %vm106, %v59, 0
    %v114 = vsel %vm106, %v60, 0
    %v117 = vsel %vm106, %v61, 0
    %119 = vmatprep.subr.mxu0 0.0
    %120 = vmatpush1.msra.mxu0 %v56
    %121 = vmatprep.subr.mxu0 0.0
    %122 = vmatpush1.msra.mxu0 %v57
    %123 = vmatprep.subr.mxu0 0.0
    %124 = vmatpush1.msra.mxu0 0.0
    %125 = vmatprep.subr.mxu0 0.0
    %126 = vmatpush1.msra.mxu0 0.0
    %127 = vmatprep.subr.mxu0 0.0
    %128 = vmatpush1.msra.mxu0 0.0
    %129 = vmatprep.subr.mxu0 0.0
    %130 = vmatpush1.msra.mxu0 0.0
    %131 = vmatprep.subr.mxu0 0.0
    %132 = vmatpush1.msra.mxu0 0.0
    %133 = vmatprep.subr.mxu0 0.0
    %134 = vmatpush1.msra.mxu0 0.0
    %135 = vmatprep.subr.mxu0 0.0
    %136 = vmatpush1.msra.mxu0 0.0
    %137 = vmatprep.subr.mxu0 0.0
    %138 = vmatpush1.msra.mxu0 0.0
    %139 = vmatprep.subr.mxu0 0.0
    %140 = vmatpush1.msra.mxu0 0.0
    %141 = vmatprep.subr.mxu0 0.0
    %142 = vmatpush1.msra.mxu0 0.0
    %143 = vmatprep.subr.mxu0 0.0
    %144 = vmatpush1.msra.mxu0 0.0
    %145 = vmatprep.subr.mxu0 0.0
    %146 = vmatpush1.msra.mxu0 0.0
    %147 = vmatprep.subr.mxu0 0.0
    %148 = vmatpush1.msra.mxu0 0.0
    %149 = vmatprep.subr.mxu0 0.0
    %150 = vmatpush1.msra.mxu0 0.0
    %151 = vmatprep.subr.mxu0 0.0
    %152 = vmatpush1.msra.mxu0 0.0
    %153 = vmatprep.subr.mxu0 0.0
    %154 = vmatpush1.msra.mxu0 0.0
    %155 = vmatprep.subr.mxu0 0.0
    %156 = vmatpush1.msra.mxu0 0.0
    %157 = vmatprep.subr.mxu0 0.0
    %158 = vmatpush1.msra.mxu0 0.0
    %159 = vmatprep.subr.mxu0 0.0
    %160 = vmatpush1.msra.mxu0 0.0
    %161 = vmatprep.subr.mxu0 0.0
    %162 = vmatpush1.msra.mxu0 0.0
    %163 = vmatprep.subr.mxu0 0.0
    %164 = vmatpush1.msra.mxu0 0.0
    %165 = vmatprep.subr.mxu0 0.0
    %166 = vmatpush1.msra.mxu0 0.0
    %167 = vmatprep.subr.mxu0 0.0
    %168 = vmatpush1.msra.mxu0 0.0
    %169 = vmatprep.subr.mxu0 0.0
    %170 = vmatpush1.msra.mxu0 0.0
    %171 = vmatprep.subr.mxu0 0.0
    %172 = vmatpush1.msra.mxu0 0.0
    %173 = vmatprep.subr.mxu0 0.0
    %174 = vmatpush1.msra.mxu0 0.0
    %175 = vmatprep.subr.mxu0 0.0
    %176 = vmatpush1.msra.mxu0 0.0
    %177 = vmatprep.subr.mxu0 0.0
    %178 = vmatpush1.msra.mxu0 0.0
    %179 = vmatprep.subr.mxu0 0.0
    %180 = vmatpush1.msra.mxu0 0.0
    %181 = vmatprep.subr.mxu0 0.0
    %182 = vmatpush1.msra.mxu0 0.0
    %183 = vmatprep.mubr.f32.mxu0 0.0
    %184 = vmatmul.mubr.f32.gmra.mrb[0].mxu0 %v108
    %v185 = vpop.f32.mrb[0].mxu0
    %v186 = vadd.f32 %v102, %v185
    %v187 = vpop.f32.mrb[0].mxu0
    %188 = vmatprep.mubr.f32.mxu0 0.0
    %189 = vmatmul.mubr.f32.gmra.mrb[0].mxu0 %v111
    %v190 = vpop.f32.mrb[0].mxu0
    %v191 = vadd.f32 %v103, %v190
    %v192 = vpop.f32.mrb[0].mxu0
    %193 = vmatprep.mubr.f32.mxu0 0.0
    %194 = vmatmul.mubr.f32.gmra.mrb[0].mxu0 %v114
    %v195 = vpop.f32.mrb[0].mxu0
    %v196 = vadd.f32 %v104, %v195
    %v197 = vpop.f32.mrb[0].mxu0
    %198 = vmatprep.mubr.f32.mxu0 0.0
    %199 = vmatmul.mubr.f32.gmra.mrb[0].mxu0 %v117
    %v200 = vpop.f32.mrb[0].mxu0
    %v201 = vadd.f32 %v105, %v200
    %v202 = vpop.f32.mrb[0].mxu0
    %203 = vdwg.mxu0
    %v204 = vmax.f32 %v186, 0.0
    %v205 = vmax.f32 %v191, 0.0
    %v206 = vmax.f32 %v196, 0.0
    %v207 = vmax.f32 %v201, 0.0
    %vm208 = vcmask 261120
    %v210 = vsel %vm208, %v62, 0
    %v213 = vsel %vm208, %v63, 0
    %215 = vmatprep.subr.mxu0 0.0
    %216 = vmatpush1.msra.mxu0 %v204
    %217 = vmatprep.subr.mxu0 0.0
    %218 = vmatpush1.msra.mxu0 %v205
    %219 = vmatprep.subr.mxu0 0.0
    %220 = vmatpush1.msra.mxu0 %v206
    %221 = vmatprep.subr.mxu0 0.0
    %222 = vmatpush1.msra.mxu0 %v207
    %223 = vmatprep.subr.mxu0 0.0
    %224 = vmatpush1.msra.mxu0 0.0
    %225 = vmatprep.subr.mxu0 0.0
    %226 = vmatpush1.msra.mxu0 0.0
    %227 = vmatprep.subr.mxu0 0.0
    %228 = vmatpush1.msra.mxu0 0.0
    %229 = vmatprep.subr.mxu0 0.0
    %230 = vmatpush1.msra.mxu0 0.0
    %231 = vmatprep.subr.mxu0 0.0
    %232 = vmatpush1.msra.mxu0 0.0
    %233 = vmatprep.subr.mxu0 0.0
    %234 = vmatpush1.msra.mxu0 0.0
    %235 = vmatprep.subr.mxu0 0.0
    %236 = vmatpush1.msra.mxu0 0.0
    %237 = vmatprep.subr.mxu0 0.0
    %238 = vmatpush1.msra.mxu0 0.0
    %239 = vmatprep.subr.mxu0 0.0
    %240 = vmatpush1.msra.mxu0 0.0
    %241 = vmatprep.subr.mxu0 0.0
    %242 = vmatpush1.msra.mxu0 0.0
    %243 = vmatprep.subr.mxu0 0.0
    %244 = vmatpush1.msra.mxu0 0.0
    %245 = vmatprep.subr.mxu0 0.0
    %246 = vmatpush1.msra.mxu0 0.0
    %247 = vmatprep.subr.mxu0 0.0
    %248 = vmatpush1.msra.mxu0 0.0
    %249 = vmatprep.subr.mxu0 0.0
    %250 = vmatpush1.msra.mxu0 0.0
    %251 = vmatprep.subr.mxu0 0.0
    %252 = vmatpush1.msra.mxu0 0.0
    %253 = vmatprep.subr.mxu0 0.0
    %254 = vmatpush1.msra.mxu0 0.0
    %255 = vmatprep.subr.mxu0 0.0
    %256 = vmatpush1.msra.mxu0 0.0
    %257 = vmatprep.subr.mxu0 0.0
    %258 = vmatpush1.msra.mxu0 0.0
    %259 = vmatprep.subr.mxu0 0.0
    %260 = vmatpush1.msra.mxu0 0.0
    %261 = vmatprep.subr.mxu0 0.0
    %262 = vmatpush1.msra.mxu0 0.0
    %263 = vmatprep.subr.mxu0 0.0
    %264 = vmatpush1.msra.mxu0 0.0
    %265 = vmatprep.subr.mxu0 0.0
    %266 = vmatpush1.msra.mxu0 0.0
    %267 = vmatprep.subr.mxu0 0.0
    %268 = vmatpush1.msra.mxu0 0.0
    %269 = vmatprep.subr.mxu0 0.0
    %270 = vmatpush1.msra.mxu0 0.0
    %271 = vmatprep.subr.mxu0 0.0
    %272 = vmatpush1.msra.mxu0 0.0
    %273 = vmatprep.subr.mxu0 0.0
    %274 = vmatpush1.msra.mxu0 0.0
    %275 = vmatprep.subr.mxu0 0.0
    %276 = vmatpush1.msra.mxu0 0.0
    %277 = vmatprep.subr.mxu0 0.0
    %278 = vmatpush1.msra.mxu0 0.0
    %279 = vmatprep.mubr.f32.mxu0 0.0
    %280 = vmatmul.mubr.f32.gmra.mrb[0].mxu0 %v210
    %v281 = vpop.f32.mrb[0].mxu0
    %v282 = vadd.f32 0.0, %v281
    %v283 = vpop.f32.mrb[0].mxu0
    %284 = vmatprep.mubr.f32.mxu0 0.0
    %285 = vmatmul.mubr.f32.gmra.mrb[0].mxu0 %v213
    %v286 = vpop.f32.mrb[0].mxu0
    %v287 = vadd.f32 0.0, %v286
    %v288 = vpop.f32.mrb[0].mxu0
    %289 = vdwg.mxu0
    %v290 = vadd.f32 %v56, %v282
    %v291 = vadd.f32 %v57, %v287
    %v292 = vld [vmem:[#allocation5] sm:$0xff]
    %v293 = vld [vmem:[#allocation5 + $0x8] sm:$0xff]
    %v294 = vld [vmem:[#allocation5 + $0x10] sm:$0xff]
    %v295 = vld [vmem:[#allocation5 + $0x18] sm:$0xff]
    %v296 = vld [vmem:[#allocation7 + $0x2] sm:$0x1]
    %v297 = vlaneseq
    %v298 = vshrl.u32 %v297, 7
    %v299 = vsub.s32 0, %v298
    %v300 = vrot.slane %v296, %v299
    %v302 = vsel %vm208, %v290, 0
    %v305 = vsel %vm208, %v291, 0
    %307 = vmatprep.subr.mxu0 0.0
    %308 = vmatpush1.msra.mxu0 %v292
    %309 = vmatprep.subr.mxu0 0.0
    %310 = vmatpush1.msra.mxu0 %v293
    %311 = vmatprep.subr.mxu0 0.0
    %312 = vmatpush1.msra.mxu0 %v294
    %313 = vmatprep.subr.mxu0 0.0
    %314 = vmatpush1.msra.mxu0 %v295
    %315 = vmatprep.subr.mxu0 0.0
    %316 = vmatpush1.msra.mxu0 0.0
    %317 = vmatprep.subr.mxu0 0.0
    %318 = vmatpush1.msra.mxu0 0.0
    %319 = vmatprep.subr.mxu0 0.0
    %320 = vmatpush1.msra.mxu0 0.0
    %321 = vmatprep.subr.mxu0 0.0
    %322 = vmatpush1.msra.mxu0 0.0
    %323 = vmatprep.subr.mxu0 0.0
    %324 = vmatpush1.msra.mxu0 0.0
    %325 = vmatprep.subr.mxu0 0.0
    %326 = vmatpush1.msra.mxu0 0.0
    %327 = vmatprep.subr.mxu0 0.0
    %328 = vmatpush1.msra.mxu0 0.0
    %329 = vmatprep.subr.mxu0 0.0
    %330 = vmatpush1.msra.mxu0 0.0
    %331 = vmatprep.subr.mxu0 0.0
    %332 = vmatpush1.msra.mxu0 0.0
    %333 = vmatprep.subr.mxu0 0.0
    %334 = vmatpush1.msra.mxu0 0.0
    %335 = vmatprep.subr.mxu0 0.0
    %336 = vmatpush1.msra.mxu0 0.0
    %337 = vmatprep.subr.mxu0 0.0
    %338 = vmatpush1.msra.mxu0 0.0
    %339 = vmatprep.subr.mxu0 0.0
    %340 = vmatpush1.msra.mxu0 0.0
    %341 = vmatprep.subr.mxu0 0.0
    %342 = vmatpush1.msra.mxu0 0.0
    %343 = vmatprep.subr.mxu0 0.0
    %344 = vmatpush1.msra.mxu0 0.0
    %345 = vmatprep.subr.mxu0 0.0
    %346 = vmatpush1.msra.mxu0 0.0
    %347 = vmatprep.subr.mxu0 0.0
    %348 = vmatpush1.msra.mxu0 0.0
    %349 = vmatprep.subr.mxu0 0.0
    %350 = vmatpush1.msra.mxu0 0.0
    %351 = vmatprep.subr.mxu0 0.0
    %352 = vmatpush1.msra.mxu0 0.0
    %353 = vmatprep.subr.mxu0 0.0
    %354 = vmatpush1.msra.mxu0 0.0
    %355 = vmatprep.subr.mxu0 0.0
    %356 = vmatpush1.msra.mxu0 0.0
    %357 = vmatprep.subr.mxu0 0.0
    %358 = vmatpush1.msra.mxu0 0.0
    %359 = vmatprep.subr.mxu0 0.0
    %360 = vmatpush1.msra.mxu0 0.0
    %361 = vmatprep.subr.mxu0 0.0
    %362 = vmatpush1.msra.mxu0 0.0
    %363 = vmatprep.subr.mxu0 0.0
    %364 = vmatpush1.msra.mxu0 0.0
    %365 = vmatprep.subr.mxu0 0.0
    %366 = vmatpush1.msra.mxu0 0.0
    %367 = vmatprep.subr.mxu0 0.0
    %368 = vmatpush1.msra.mxu0 0.0
    %369 = vmatprep.subr.mxu0 0.0
    %370 = vmatpush1.msra.mxu0 0.0
    %371 = vmatprep.mubr.f32.mxu0 0.0
    %372 = vmatmul.mubr.f32.gmra.mrb[0].mxu0 %v302
    %v373 = vpop.f32.mrb[0].mxu0
    %v374 = vadd.f32 %v300, %v373
    %v375 = vpop.f32.mrb[0].mxu0
    %376 = vmatprep.mubr.f32.mxu0 0.0
    %377 = vmatmul.mubr.f32.gmra.mrb[0].mxu0 %v305
    %v378 = vpop.f32.mrb[0].mxu0
    %v379 = vadd.f32 %v300, %v378
    %v380 = vpop.f32.mrb[0].mxu0
    %381 = vdwg.mxu0
    %v382 = vmax.f32 %v374, 0.0
    %v383 = vmax.f32 %v379, 0.0
    %v384 = vld [vmem:[#allocation7 + $0x3] sm:$0x1]
    %v385 = vlaneseq
    %v386 = vshrl.u32 %v385, 7
    %v387 = vsub.s32 0, %v386
    %v388 = vrot.slane %v384, %v387
    %v389 = vmul.f32 %v382, %v388
    %v390 = vmul.f32 %v383, %v388
    %v391 = vld [vmem:[#allocation7 + $0x4] sm:$0x1]
    %v392 = vlaneseq
    %v393 = vshrl.u32 %v392, 7
    %v394 = vsub.s32 0, %v393
    %v395 = vrot.slane %v391, %v394
    %v396 = vadd.f32 %v389, %v395
    %v397 = vadd.f32 %v390, %v395
    %398 = vmatprep.subr.mxu0 0.0
    %399 = vmatpush1.msra.mxu0 %v396
    %400 = vmatprep.subr.mxu0 0.0
    %401 = vmatpush1.msra.mxu0 %v397
    %402 = vmatprep.subr.mxu0 0.0
    %403 = vmatpush1.msra.mxu0 0.0
    %404 = vmatprep.subr.mxu0 0.0
    %405 = vmatpush1.msra.mxu0 0.0
    %406 = vmatprep.subr.mxu0 0.0
    %407 = vmatpush1.msra.mxu0 0.0
    %408 = vmatprep.subr.mxu0 0.0
    %409 = vmatpush1.msra.mxu0 0.0
    %410 = vmatprep.subr.mxu0 0.0
    %411 = vmatpush1.msra.mxu0 0.0
    %412 = vmatprep.subr.mxu0 0.0
    %413 = vmatpush1.msra.mxu0 0.0
    %414 = vmatprep.subr.mxu0 0.0
    %415 = vmatpush1.msra.mxu0 0.0
    %416 = vmatprep.subr.mxu0 0.0
    %417 = vmatpush1.msra.mxu0 0.0
    %418 = vmatprep.subr.mxu0 0.0
    %419 = vmatpush1.msra.mxu0 0.0
    %420 = vmatprep.subr.mxu0 0.0
    %421 = vmatpush1.msra.mxu0 0.0
    %422 = vmatprep.subr.mxu0 0.0
    %423 = vmatpush1.msra.mxu0 0.0
    %424 = vmatprep.subr.mxu0 0.0
    %425 = vmatpush1.msra.mxu0 0.0
    %426 = vmatprep.subr.mxu0 0.0
    %427 = vmatpush1.msra.mxu0 0.0
    %428 = vmatprep.subr.mxu0 0.0
    %429 = vmatpush1.msra.mxu0 0.0
    %430 = vmatprep.subr.mxu0 0.0
    %431 = vmatpush1.msra.mxu0 0.0
    %432 = vmatprep.subr.mxu0 0.0
    %433 = vmatpush1.msra.mxu0 0.0
    %434 = vmatprep.subr.mxu0 0.0
    %435 = vmatpush1.msra.mxu0 0.0
    %436 = vmatprep.subr.mxu0 0.0
    %437 = vmatpush1.msra.mxu0 0.0
    %438 = vmatprep.subr.mxu0 0.0
    %439 = vmatpush1.msra.mxu0 0.0
    %440 = vmatprep.subr.mxu0 0.0
    %441 = vmatpush1.msra.mxu0 0.0
    %442 = vmatprep.subr.mxu0 0.0
    %443 = vmatpush1.msra.mxu0 0.0
    %444 = vmatprep.subr.mxu0 0.0
    %445 = vmatpush1.msra.mxu0 0.0
    %446 = vmatprep.subr.mxu0 0.0
    %447 = vmatpush1.msra.mxu0 0.0
    %448 = vmatprep.subr.mxu0 0.0
    %449 = vmatpush1.msra.mxu0 0.0
    %450 = vmatprep.subr.mxu0 0.0
    %451 = vmatpush1.msra.mxu0 0.0
    %452 = vmatprep.subr.mxu0 0.0
    %453 = vmatpush1.msra.mxu0 0.0
    %454 = vmatprep.subr.mxu0 0.0
    %455 = vmatpush1.msra.mxu0 0.0
    %456 = vmatprep.subr.mxu0 0.0
    %457 = vmatpush1.msra.mxu0 0.0
    %458 = vmatprep.subr.mxu0 0.0
    %459 = vmatpush1.msra.mxu0 0.0
    %460 = vmatprep.subr.mxu0 0.0
    %461 = vmatpush1.msra.mxu0 0.0
    %462 = vmatprep.mubr.f32.mxu0 0.0
    %463 = vmatmul.mubr.f32.gmra.mrb[0].mxu0 %v108
    %v464 = vpop.f32.mrb[0].mxu0
    %v465 = vadd.f32 %v102, %v464
    %v466 = vpop.f32.mrb[0].mxu0
    %467 = vmatprep.mubr.f32.mxu0 0.0
    %468 = vmatmul.mubr.f32.gmra.mrb[0].mxu0 %v111
    %v469 = vpop.f32.mrb[0].mxu0
    %v470 = vadd.f32 %v103, %v469
    %v471 = vpop.f32.mrb[0].mxu0
    %472 = vmatprep.mubr.f32.mxu0 0.0
    %473 = vmatmul.mubr.f32.gmra.mrb[0].mxu0 %v114
    %v474 = vpop.f32.mrb[0].mxu0
    %v475 = vadd.f32 %v104, %v474
    %v476 = vpop.f32.mrb[0].mxu0
    %477 = vmatprep.mubr.f32.mxu0 0.0
    %478 = vmatmul.mubr.f32.gmra.mrb[0].mxu0 %v117
    %v479 = vpop.f32.mrb[0].mxu0
    %v480 = vadd.f32 %v105, %v479
    %v481 = vpop.f32.mrb[0].mxu0
    %482 = vdwg.mxu0
    %v483 = vmax.f32 %v465, 0.0
    %v484 = vmax.f32 %v470, 0.0
    %v485 = vmax.f32 %v475, 0.0
    %v486 = vmax.f32 %v480, 0.0
    %487 = vmatprep.subr.mxu0 0.0
    %488 = vmatpush1.msra.mxu0 %v483
    %489 = vmatprep.subr.mxu0 0.0
    %490 = vmatpush1.msra.mxu0 %v484
    %491 = vmatprep.subr.mxu0 0.0
    %492 = vmatpush1.msra.mxu0 %v485
    %493 = vmatprep.subr.mxu0 0.0
    %494 = vmatpush1.msra.mxu0 %v486
    %495 = vmatprep.subr.mxu0 0.0
    %496 = vmatpush1.msra.mxu0 0.0
    %497 = vmatprep.subr.mxu0 0.0
    %498 = vmatpush1.msra.mxu0 0.0
    %499 = vmatprep.subr.mxu0 0.0
    %500 = vmatpush1.msra.mxu0 0.0
    %501 = vmatprep.subr.mxu0 0.0
    %502 = vmatpush1.msra.mxu0 0.0
    %503 = vmatprep.subr.mxu0 0.0
    %504 = vmatpush1.msra.mxu0 0.0
    %505 = vmatprep.subr.mxu0 0.0
    %506 = vmatpush1.msra.mxu0 0.0
    %507 = vmatprep.subr.mxu0 0.0
    %508 = vmatpush1.msra.mxu0 0.0
    %509 = vmatprep.subr.mxu0 0.0
    %510 = vmatpush1.msra.mxu0 0.0
    %511 = vmatprep.subr.mxu0 0.0
    %512 = vmatpush1.msra.mxu0 0.0
    %513 = vmatprep.subr.mxu0 0.0
    %514 = vmatpush1.msra.mxu0 0.0
    %515 = vmatprep.subr.mxu0 0.0
    %516 = vmatpush1.msra.mxu0 0.0
    %517 = vmatprep.subr.mxu0 0.0
    %518 = vmatpush1.msra.mxu0 0.0
    %519 = vmatprep.subr.mxu0 0.0
    %520 = vmatpush1.msra.mxu0 0.0
    %521 = vmatprep.subr.mxu0 0.0
    %522 = vmatpush1.msra.mxu0 0.0
    %523 = vmatprep.subr.mxu0 0.0
    %524 = vmatpush1.msra.mxu0 0.0
    %525 = vmatprep.subr.mxu0 0.0
    %526 = vmatpush1.msra.mxu0 0.0
    %527 = vmatprep.subr.mxu0 0.0
    %528 = vmatpush1.msra.mxu0 0.0
    %529 = vmatprep.subr.mxu0 0.0
    %530 = vmatpush1.msra.mxu0 0.0
    %531 = vmatprep.subr.mxu0 0.0
    %532 = vmatpush1.msra.mxu0 0.0
    %533 = vmatprep.subr.mxu0 0.0
    %534 = vmatpush1.msra.mxu0 0.0
    %535 = vmatprep.subr.mxu0 0.0
    %536 = vmatpush1.msra.mxu0 0.0
    %537 = vmatprep.subr.mxu0 0.0
    %538 = vmatpush1.msra.mxu0 0.0
    %539 = vmatprep.subr.mxu0 0.0
    %540 = vmatpush1.msra.mxu0 0.0
    %541 = vmatprep.subr.mxu0 0.0
    %542 = vmatpush1.msra.mxu0 0.0
    %543 = vmatprep.subr.mxu0 0.0
    %544 = vmatpush1.msra.mxu0 0.0
    %545 = vmatprep.subr.mxu0 0.0
    %546 = vmatpush1.msra.mxu0 0.0
    %547 = vmatprep.subr.mxu0 0.0
    %548 = vmatpush1.msra.mxu0 0.0
    %549 = vmatprep.subr.mxu0 0.0
    %550 = vmatpush1.msra.mxu0 0.0
    %551 = vmatprep.mubr.f32.mxu0 0.0
    %552 = vmatmul.mubr.f32.gmra.mrb[0].mxu0 %v210
    %v553 = vpop.f32.mrb[0].mxu0
    %v554 = vadd.f32 0.0, %v553
    %v555 = vpop.f32.mrb[0].mxu0
    %556 = vmatprep.mubr.f32.mxu0 0.0
    %557 = vmatmul.mubr.f32.gmra.mrb[0].mxu0 %v213
    %v558 = vpop.f32.mrb[0].mxu0
    %v559 = vadd.f32 0.0, %v558
    %v560 = vpop.f32.mrb[0].mxu0
    %561 = vdwg.mxu0
    %v562 = vadd.f32 %v396, %v554
    %v563 = vadd.f32 %v397, %v559
    %v564 = vld [vmem:[#allocation5 + $0x20] sm:$0xff]
    %v565 = vld [vmem:[#allocation5 + $0x28] sm:$0xff]
    %v566 = vld [vmem:[#allocation5 + $0x30] sm:$0xff]
    %v567 = vld [vmem:[#allocation5 + $0x38] sm:$0xff]
    %v568 = vld [vmem:[#allocation7 + $0x5] sm:$0x1]
    %v569 = vlaneseq
    %v570 = vshrl.u32 %v569, 7
    %v571 = vsub.s32 0, %v570
    %v572 = vrot.slane %v568, %v571
    %v574 = vsel %vm208, %v562, 0
    %v577 = vsel %vm208, %v563, 0
    %579 = vmatprep.subr.mxu0 0.0
    %580 = vmatpush1.msra.mxu0 %v564
    %581 = vmatprep.subr.mxu0 0.0
    %582 = vmatpush1.msra.mxu0 %v565
    %583 = vmatprep.subr.mxu0 0.0
    %584 = vmatpush1.msra.mxu0 %v566
    %585 = vmatprep.subr.mxu0 0.0
    %586 = vmatpush1.msra.mxu0 %v567
    %587 = vmatprep.subr.mxu0 0.0
    %588 = vmatpush1.msra.mxu0 0.0
    %589 = vmatprep.subr.mxu0 0.0
    %590 = vmatpush1.msra.mxu0 0.0
    %591 = vmatprep.subr.mxu0 0.0
    %592 = vmatpush1.msra.mxu0 0.0
    %593 = vmatprep.subr.mxu0 0.0
    %594 = vmatpush1.msra.mxu0 0.0
    %595 = vmatprep.subr.mxu0 0.0
    %596 = vmatpush1.msra.mxu0 0.0
    %597 = vmatprep.subr.mxu0 0.0
    %598 = vmatpush1.msra.mxu0 0.0
    %599 = vmatprep.subr.mxu0 0.0
    %600 = vmatpush1.msra.mxu0 0.0
    %601 = vmatprep.subr.mxu0 0.0
    %602 = vmatpush1.msra.mxu0 0.0
    %603 = vmatprep.subr.mxu0 0.0
    %604 = vmatpush1.msra.mxu0 0.0
    %605 = vmatprep.subr.mxu0 0.0
    %606 = vmatpush1.msra.mxu0 0.0
    %607 = vmatprep.subr.mxu0 0.0
    %608 = vmatpush1.msra.mxu0 0.0
    %609 = vmatprep.subr.mxu0 0.0
    %610 = vmatpush1.msra.mxu0 0.0
    %611 = vmatprep.subr.mxu0 0.0
    %612 = vmatpush1.msra.mxu0 0.0
    %613 = vmatprep.subr.mxu0 0.0
    %614 = vmatpush1.msra.mxu0 0.0
    %615 = vmatprep.subr.mxu0 0.0
    %616 = vmatpush1.msra.mxu0 0.0
    %617 = vmatprep.subr.mxu0 0.0
    %618 = vmatpush1.msra.mxu0 0.0
    %619 = vmatprep.subr.mxu0 0.0
    %620 = vmatpush1.msra.mxu0 0.0
    %621 = vmatprep.subr.mxu0 0.0
    %622 = vmatpush1.msra.mxu0 0.0
    %623 = vmatprep.subr.mxu0 0.0
    %624 = vmatpush1.msra.mxu0 0.0
    %625 = vmatprep.subr.mxu0 0.0
    %626 = vmatpush1.msra.mxu0 0.0
    %627 = vmatprep.subr.mxu0 0.0
    %628 = vmatpush1.msra.mxu0 0.0
    %629 = vmatprep.subr.mxu0 0.0
    %630 = vmatpush1.msra.mxu0 0.0
    %631 = vmatprep.subr.mxu0 0.0
    %632 = vmatpush1.msra.mxu0 0.0
    %633 = vmatprep.subr.mxu0 0.0
    %634 = vmatpush1.msra.mxu0 0.0
    %635 = vmatprep.subr.mxu0 0.0
    %636 = vmatpush1.msra.mxu0 0.0
    %637 = vmatprep.subr.mxu0 0.0
    %638 = vmatpush1.msra.mxu0 0.0
    %639 = vmatprep.subr.mxu0 0.0
    %640 = vmatpush1.msra.mxu0 0.0
    %641 = vmatprep.subr.mxu0 0.0
    %642 = vmatpush1.msra.mxu0 0.0
    %643 = vmatprep.mubr.f32.mxu0 0.0
    %644 = vmatmul.mubr.f32.gmra.mrb[0].mxu0 %v574
    %v645 = vpop.f32.mrb[0].mxu0
    %v646 = vadd.f32 %v572, %v645
    %v647 = vpop.f32.mrb[0].mxu0
    %648 = vmatprep.mubr.f32.mxu0 0.0
    %649 = vmatmul.mubr.f32.gmra.mrb[0].mxu0 %v577
    %v650 = vpop.f32.mrb[0].mxu0
    %v651 = vadd.f32 %v572, %v650
    %v652 = vpop.f32.mrb[0].mxu0
    %653 = vdwg.mxu0
    %v654 = vmax.f32 %v646, 0.0
    %v655 = vmax.f32 %v651, 0.0
    %v656 = vld [vmem:[#allocation7 + $0x6] sm:$0x1]
    %v657 = vlaneseq
    %v658 = vshrl.u32 %v657, 7
    %v659 = vsub.s32 0, %v658
    %v660 = vrot.slane %v656, %v659
    %v661 = vmul.f32 %v654, %v660
    %v662 = vmul.f32 %v655, %v660
    %v663 = vld [vmem:[#allocation7 + $0x7] sm:$0x1]
    %v664 = vlaneseq
    %v665 = vshrl.u32 %v664, 7
    %v666 = vsub.s32 0, %v665
    %v667 = vrot.slane %v663, %v666
    %v668 = vadd.f32 %v661, %v667
    %v669 = vadd.f32 %v662, %v667
    %672 = vrot.lane.b32.xlu0 %v668, 32
    %v673 = vpop.permute.xlu0 %672
    %674 = vrot.lane.b32.xlu0 %v669, 32
    %v675 = vpop.permute.xlu0 %674
    %v678 = vsel %vm208, %v396, %v673
    %v679 = vsel %vm208, %v397, %v675
    %v680 = vld [vmem:[#allocation5 + $0x40] sm:$0xff]
    %v681 = vld [vmem:[#allocation5 + $0x48] sm:$0xff]
    %v682 = vld [vmem:[#allocation5 + $0x50] sm:$0xff]
    %v683 = vld [vmem:[#allocation5 + $0x58] sm:$0xff]
    %v684 = vld [vmem:[#allocation5 + $0x60] sm:$0xff]
    %v685 = vld [vmem:[#allocation5 + $0x68] sm:$0xff]
    %v686 = vld [vmem:[#allocation5 + $0x70] sm:$0xff]
    %v687 = vld [vmem:[#allocation5 + $0x78] sm:$0xff]
    %v688 = vld [vmem:[#allocation5 + $0x80] sm:$0xff]
    %v689 = vld [vmem:[#allocation5 + $0x88] sm:$0xff]
    %v690 = vld [vmem:[#allocation5 + $0x90] sm:$0xff]
    %v691 = vld [vmem:[#allocation5 + $0x98] sm:$0xff]
    %v692 = vld [vmem:[#allocation7 + $0x8] sm:$0x1]
    %v693 = vlaneseq
    %v694 = vshrl.u32 %v693, 7
    %v695 = vsub.s32 0, %v694
    %v696 = vrot.slane %v692, %v695
    %vm697 = vcmask 785408
    %v699 = vsel %vm697, %v678, 0
    %v702 = vsel %vm697, %v679, 0
    %704 = vmatprep.subr.mxu0 0.0
    %705 = vmatpush1.msra.mxu0 %v680
    %706 = vmatprep.subr.mxu0 0.0
    %707 = vmatpush1.msra.mxu0 %v681
    %708 = vmatprep.subr.mxu0 0.0
    %709 = vmatpush1.msra.mxu0 %v682
    %710 = vmatprep.subr.mxu0 0.0
    %711 = vmatpush1.msra.mxu0 %v683
    %712 = vmatprep.subr.mxu0 0.0
    %713 = vmatpush1.msra.mxu0 %v684
    %714 = vmatprep.subr.mxu0 0.0
    %715 = vmatpush1.msra.mxu0 %v685
    %716 = vmatprep.subr.mxu0 0.0
    %717 = vmatpush1.msra.mxu0 %v686
    %718 = vmatprep.subr.mxu0 0.0
    %719 = vmatpush1.msra.mxu0 %v687
    %720 = vmatprep.subr.mxu0 0.0
    %721 = vmatpush1.msra.mxu0 %v688
    %722 = vmatprep.subr.mxu0 0.0
    %723 = vmatpush1.msra.mxu0 %v689
    %724 = vmatprep.subr.mxu0 0.0
    %725 = vmatpush1.msra.mxu0 %v690
    %726 = vmatprep.subr.mxu0 0.0
    %727 = vmatpush1.msra.mxu0 %v691
    %728 = vmatprep.subr.mxu0 0.0
    %729 = vmatpush1.msra.mxu0 0.0
    %730 = vmatprep.subr.mxu0 0.0
    %731 = vmatpush1.msra.mxu0 0.0
    %732 = vmatprep.subr.mxu0 0.0
    %733 = vmatpush1.msra.mxu0 0.0
    %734 = vmatprep.subr.mxu0 0.0
    %735 = vmatpush1.msra.mxu0 0.0
    %736 = vmatprep.subr.mxu0 0.0
    %737 = vmatpush1.msra.mxu0 0.0
    %738 = vmatprep.subr.mxu0 0.0
    %739 = vmatpush1.msra.mxu0 0.0
    %740 = vmatprep.subr.mxu0 0.0
    %741 = vmatpush1.msra.mxu0 0.0
    %742 = vmatprep.subr.mxu0 0.0
    %743 = vmatpush1.msra.mxu0 0.0
    %744 = vmatprep.subr.mxu0 0.0
    %745 = vmatpush1.msra.mxu0 0.0
    %746 = vmatprep.subr.mxu0 0.0
    %747 = vmatpush1.msra.mxu0 0.0
    %748 = vmatprep.subr.mxu0 0.0
    %749 = vmatpush1.msra.mxu0 0.0
    %750 = vmatprep.subr.mxu0 0.0
    %751 = vmatpush1.msra.mxu0 0.0
    %752 = vmatprep.subr.mxu0 0.0
    %753 = vmatpush1.msra.mxu0 0.0
    %754 = vmatprep.subr.mxu0 0.0
    %755 = vmatpush1.msra.mxu0 0.0
    %756 = vmatprep.subr.mxu0 0.0
    %757 = vmatpush1.msra.mxu0 0.0
    %758 = vmatprep.subr.mxu0 0.0
    %759 = vmatpush1.msra.mxu0 0.0
    %760 = vmatprep.subr.mxu0 0.0
    %761 = vmatpush1.msra.mxu0 0.0
    %762 = vmatprep.subr.mxu0 0.0
    %763 = vmatpush1.msra.mxu0 0.0
    %764 = vmatprep.subr.mxu0 0.0
    %765 = vmatpush1.msra.mxu0 0.0
    %766 = vmatprep.subr.mxu0 0.0
    %767 = vmatpush1.msra.mxu0 0.0
    %768 = vmatprep.mubr.f32.mxu0 0.0
    %769 = vmatmul.mubr.f32.gmra.mrb[0].mxu0 %v699
    %v770 = vpop.f32.mrb[0].mxu0
    %v771 = vadd.f32 %v696, %v770
    %v772 = vpop.f32.mrb[0].mxu0
    %773 = vmatprep.mubr.f32.mxu0 0.0
    %774 = vmatmul.mubr.f32.gmra.mrb[0].mxu0 %v702
    %v775 = vpop.f32.mrb[0].mxu0
    %v776 = vadd.f32 %v696, %v775
    %v777 = vpop.f32.mrb[0].mxu0
    %778 = vdwg.mxu0
    %v779 = vmax.f32 %v771, 0.0
    %v780 = vmax.f32 %v776, 0.0
    %v781 = vld [vmem:[#allocation7 + $0x9] sm:$0x1]
    %v782 = vlaneseq
    %v783 = vshrl.u32 %v782, 7
    %v784 = vsub.s32 0, %v783
    %v785 = vrot.slane %v781, %v784
    %v786 = vmul.f32 %v779, %v785
    %v787 = vmul.f32 %v780, %v785
    %v788 = vld [vmem:[#allocation7 + $0xa] sm:$0x1]
    %v789 = vlaneseq
    %v790 = vshrl.u32 %v789, 7
    %v791 = vsub.s32 0, %v790
    %v792 = vrot.slane %v788, %v791
    %v793 = vadd.f32 %v786, %v792
    %v794 = vadd.f32 %v787, %v792
    %v795 = vsel %vm697, %v793, -inf
    %v796 = vsel %vm697, %v794, -inf
    %v797 = vmax.f32 %v795, %v796
    %v798 = vrot.slane %v797, 4
    %v799 = vmax.f32 %v797, %v798
    %v800 = vrot.slane %v799, 2
    %v801 = vmax.f32 %v799, %v800
    %v802 = vrot.slane %v801, 1
    %v803 = vmax.f32 %v801, %v802
    %v804 = vld [vmem:[#allocation5 + $0xa0] sm:$0xff]
    %v805 = vld [vmem:[#allocation5 + $0xa8] sm:$0xff]
    %v806 = vld [vmem:[#allocation5 + $0xb0] sm:$0xff]
    %v807 = vld [vmem:[#allocation5 + $0xb8] sm:$0xff]
    %v808 = vld [vmem:[#allocation5 + $0xc0] sm:$0xff]
    %v809 = vld [vmem:[#allocation5 + $0xc8] sm:$0xff]
    %v810 = vld [vmem:[#allocation5 + $0xd0] sm:$0xff]
    %v811 = vld [vmem:[#allocation5 + $0xd8] sm:$0xff]
    %v812 = vld [vmem:[#allocation5 + $0xe0] sm:$0xff]
    %v813 = vld [vmem:[#allocation5 + $0xe8] sm:$0xff]
    %v814 = vld [vmem:[#allocation5 + $0xf0] sm:$0xff]
    %v815 = vld [vmem:[#allocation5 + $0xf8] sm:$0xff]
    %v816 = vld [vmem:[#allocation7 + $0xb] sm:$0x1]
    %v818 = vsel %vm697, %v803, 0
    %820 = vmatprep.subr.mxu0 0.0
    %821 = vmatpush1.msra.mxu0 %v804
    %822 = vmatprep.subr.mxu0 0.0
    %823 = vmatpush1.msra.mxu0 %v805
    %824 = vmatprep.subr.mxu0 0.0
    %825 = vmatpush1.msra.mxu0 %v806
    %826 = vmatprep.subr.mxu0 0.0
    %827 = vmatpush1.msra.mxu0 %v807
    %828 = vmatprep.subr.mxu0 0.0
    %829 = vmatpush1.msra.mxu0 %v808
    %830 = vmatprep.subr.mxu0 0.0
    %831 = vmatpush1.msra.mxu0 %v809
    %832 = vmatprep.subr.mxu0 0.0
    %833 = vmatpush1.msra.mxu0 %v810
    %834 = vmatprep.subr.mxu0 0.0
    %835 = vmatpush1.msra.mxu0 %v811
    %836 = vmatprep.subr.mxu0 0.0
    %837 = vmatpush1.msra.mxu0 %v812
    %838 = vmatprep.subr.mxu0 0.0
    %839 = vmatpush1.msra.mxu0 %v813
    %840 = vmatprep.subr.mxu0 0.0
    %841 = vmatpush1.msra.mxu0 %v814
    %842 = vmatprep.subr.mxu0 0.0
    %843 = vmatpush1.msra.mxu0 %v815
    %844 = vmatprep.subr.mxu0 0.0
    %845 = vmatpush1.msra.mxu0 0.0
    %846 = vmatprep.subr.mxu0 0.0
    %847 = vmatpush1.msra.mxu0 0.0
    %848 = vmatprep.subr.mxu0 0.0
    %849 = vmatpush1.msra.mxu0 0.0
    %850 = vmatprep.subr.mxu0 0.0
    %851 = vmatpush1.msra.mxu0 0.0
    %852 = vmatprep.subr.mxu0 0.0
    %853 = vmatpush1.msra.mxu0 0.0
    %854 = vmatprep.subr.mxu0 0.0
    %855 = vmatpush1.msra.mxu0 0.0
    %856 = vmatprep.subr.mxu0 0.0
    %857 = vmatpush1.msra.mxu0 0.0
    %858 = vmatprep.subr.mxu0 0.0
    %859 = vmatpush1.msra.mxu0 0.0
    %860 = vmatprep.subr.mxu0 0.0
    %861 = vmatpush1.msra.mxu0 0.0
    %862 = vmatprep.subr.mxu0 0.0
    %863 = vmatpush1.msra.mxu0 0.0
    %864 = vmatprep.subr.mxu0 0.0
    %865 = vmatpush1.msra.mxu0 0.0
    %866 = vmatprep.subr.mxu0 0.0
    %867 = vmatpush1.msra.mxu0 0.0
    %868 = vmatprep.subr.mxu0 0.0
    %869 = vmatpush1.msra.mxu0 0.0
    %870 = vmatprep.subr.mxu0 0.0
    %871 = vmatpush1.msra.mxu0 0.0
    %872 = vmatprep.subr.mxu0 0.0
    %873 = vmatpush1.msra.mxu0 0.0
    %874 = vmatprep.subr.mxu0 0.0
    %875 = vmatpush1.msra.mxu0 0.0
    %876 = vmatprep.subr.mxu0 0.0
    %877 = vmatpush1.msra.mxu0 0.0
    %878 = vmatprep.subr.mxu0 0.0
    %879 = vmatpush1.msra.mxu0 0.0
    %880 = vmatprep.subr.mxu0 0.0
    %881 = vmatpush1.msra.mxu0 0.0
    %882 = vmatprep.subr.mxu0 0.0
    %883 = vmatpush1.msra.mxu0 0.0
    %884 = vmatprep.mubr.f32.mxu0 0.0
    %885 = vmatmul.mubr.f32.gmra.mrb[0].mxu0 %v818
    %v886 = vpop.f32.mrb[0].mxu0
    %v887 = vadd.f32 %v816, %v886
    %v888 = vpop.f32.mrb[0].mxu0
    %889 = vdwg.mxu0
    %v890 = vmax.f32 %v887, 0.0
    %v891 = vld [vmem:[#allocation7 + $0xc] sm:$0x1]
    %v892 = vmul.f32 %v890, %v891
    %v893 = vld [vmem:[#allocation7 + $0xd] sm:$0x1]
    %v894 = vadd.f32 %v892, %v893
    %v895 = vld [vmem:[#allocation5 + $0x100] sm:$0xff]
    %v896 = vld [vmem:[#allocation5 + $0x108] sm:$0xff]
    %v897 = vld [vmem:[#allocation5 + $0x110] sm:$0xff]
    %v898 = vld [vmem:[#allocation5 + $0x118] sm:$0xff]
    %v899 = vld [vmem:[#allocation5 + $0x120] sm:$0xff]
    %v900 = vld [vmem:[#allocation5 + $0x128] sm:$0xff]
    %v901 = vld [vmem:[#allocation5 + $0x130] sm:$0xff]
    %v902 = vld [vmem:[#allocation5 + $0x138] sm:$0xff]
    %v903 = vld [vmem:[#allocation5 + $0x140] sm:$0xff]
    %v904 = vld [vmem:[#allocation5 + $0x148] sm:$0xff]
    %v905 = vld [vmem:[#allocation5 + $0x150] sm:$0xff]
    %v906 = vld [vmem:[#allocation5 + $0x158] sm:$0xff]
    %v907 = vld [vmem:[#allocation7 + $0xe] sm:$0x1]
    %v909 = vsel %vm697, %v894, 0
    %911 = vmatprep.subr.mxu0 0.0
    %912 = vmatpush1.msra.mxu0 %v895
    %913 = vmatprep.subr.mxu0 0.0
    %914 = vmatpush1.msra.mxu0 %v896
    %915 = vmatprep.subr.mxu0 0.0
    %916 = vmatpush1.msra.mxu0 %v897
    %917 = vmatprep.subr.mxu0 0.0
    %918 = vmatpush1.msra.mxu0 %v898
    %919 = vmatprep.subr.mxu0 0.0
    %920 = vmatpush1.msra.mxu0 %v899
    %921 = vmatprep.subr.mxu0 0.0
    %922 = vmatpush1.msra.mxu0 %v900
    %923 = vmatprep.subr.mxu0 0.0
    %924 = vmatpush1.msra.mxu0 %v901
    %925 = vmatprep.subr.mxu0 0.0
    %926 = vmatpush1.msra.mxu0 %v902
    %927 = vmatprep.subr.mxu0 0.0
    %928 = vmatpush1.msra.mxu0 %v903
    %929 = vmatprep.subr.mxu0 0.0
    %930 = vmatpush1.msra.mxu0 %v904
    %931 = vmatprep.subr.mxu0 0.0
    %932 = vmatpush1.msra.mxu0 %v905
    %933 = vmatprep.subr.mxu0 0.0
    %934 = vmatpush1.msra.mxu0 %v906
    %935 = vmatprep.subr.mxu0 0.0
    %936 = vmatpush1.msra.mxu0 0.0
    %937 = vmatprep.subr.mxu0 0.0
    %938 = vmatpush1.msra.mxu0 0.0
    %939 = vmatprep.subr.mxu0 0.0
    %940 = vmatpush1.msra.mxu0 0.0
    %941 = vmatprep.subr.mxu0 0.0
    %942 = vmatpush1.msra.mxu0 0.0
    %943 = vmatprep.subr.mxu0 0.0
    %944 = vmatpush1.msra.mxu0 0.0
    %945 = vmatprep.subr.mxu0 0.0
    %946 = vmatpush1.msra.mxu0 0.0
    %947 = vmatprep.subr.mxu0 0.0
    %948 = vmatpush1.msra.mxu0 0.0
    %949 = vmatprep.subr.mxu0 0.0
    %950 = vmatpush1.msra.mxu0 0.0
    %951 = vmatprep.subr.mxu0 0.0
    %952 = vmatpush1.msra.mxu0 0.0
    %953 = vmatprep.subr.mxu0 0.0
    %954 = vmatpush1.msra.mxu0 0.0
    %955 = vmatprep.subr.mxu0 0.0
    %956 = vmatpush1.msra.mxu0 0.0
    %957 = vmatprep.subr.mxu0 0.0
    %958 = vmatpush1.msra.mxu0 0.0
    %959 = vmatprep.subr.mxu0 0.0
    %960 = vmatpush1.msra.mxu0 0.0
    %961 = vmatprep.subr.mxu0 0.0
    %962 = vmatpush1.msra.mxu0 0.0
    %963 = vmatprep.subr.mxu0 0.0
    %964 = vmatpush1.msra.mxu0 0.0
    %965 = vmatprep.subr.mxu0 0.0
    %966 = vmatpush1.msra.mxu0 0.0
    %967 = vmatprep.subr.mxu0 0.0
    %968 = vmatpush1.msra.mxu0 0.0
    %969 = vmatprep.subr.mxu0 0.0
    %970 = vmatpush1.msra.mxu0 0.0
    %971 = vmatprep.subr.mxu0 0.0
    %972 = vmatpush1.msra.mxu0 0.0
    %973 = vmatprep.subr.mxu0 0.0
    %974 = vmatpush1.msra.mxu0 0.0
    %975 = vmatprep.mubr.f32.mxu0 0.0
    %976 = vmatmul.mubr.f32.gmra.mrb[0].mxu0 %v909
    %v977 = vpop.f32.mrb[0].mxu0
    %v978 = vadd.f32 %v907, %v977
    %v979 = vpop.f32.mrb[0].mxu0
    %980 = vdwg.mxu0
    %v981 = vmax.f32 %v978, 0.0
    %v982 = vld [vmem:[#allocation7 + $0xf] sm:$0x1]
    %v983 = vmul.f32 %v981, %v982
    %v984 = vld [vmem:[#allocation7 + $0x10] sm:$0x1]
    %v985 = vadd.f32 %v983, %v984
    %vm986 = vcmask 57344
    %987 = vst.msk [vmem:[#allocation8] sm:$0x1] %vm986, %v985
    // Predicated region
    $region26: #{tpu_custom_call.1} parent=1 // pred_check
      _
    $region27: #{tpu_custom_call.1} parent=1 // pred_check_branch
      %989 = sbr.rel (0) target = $region29
    $region28: #{tpu_custom_call.1} parent=1 // pred_region
      %s991 = ssub.s32 16, 16
      %992 = vsyncadd [#allocation4], %s991
      %s994 = sshll.u32 [#allocation8], 4
      %s995 = int_to_ptr.vmem [resolvable:$true] %s994
      %997 = dma.vmem_to_hbm [thread:$0]  %s995, 16, %s3, [#allocation4]
    $region29: #{tpu_custom_call.1} parent=1 // pred_fallthru
      _
    // Predicated region
    $region30: #{tpu_custom_call.1} parent=1 // pred_check
      _
    $region31: #{tpu_custom_call.1} parent=1 // pred_check_branch
      %999 = sbr.rel (0) target = $region33
    $region32: #{tpu_custom_call.1} parent=1 // pred_region
      %1000 = dma.done [#allocation4], 16
    $region33: #{tpu_custom_call.1} parent=1 // pred_fallthru
      _
    %1001 = vsyncpa [#allocation3], 1
    %1002 = vsyncpa [#allocation6], 1
    %1003 = vsyncpa [#allocation4], 1

</llo_original>
